<compile_context>
chip_gen: v7x
topology: tpu7x:2x2x1
jax: 0.10.0
libtpu: 0.0.40
codegen_flags: <defaults>
</compile_context>

<pallas_src>
import jax
import jax.numpy as jnp
from jax.experimental import pallas as pl
from jax.experimental.pallas import tpu as pltpu

IN_FEATURES = 3
OUT_FEATURES = 1
MAX_TILE_B = 512  # rows per grid step (keeps VMEM ~O(0.5 MiB) even on v7x)


def _round_up(n, m):
    return ((n + m - 1) // m) * m


def _linear3_kernel(params_ref, x_ref, o_ref):
    # params_ref: SMEM f32[4] = [w0, w1, w2, b]
    # x_ref:      VMEM (TB, 3)
    # o_ref:      VMEM (TB, 1)
    x = x_ref[...]
    w0 = params_ref[0]
    w1 = params_ref[1]
    w2 = params_ref[2]
    b = params_ref[3]
    y = x[:, 0:1] * w0 + x[:, 1:2] * w1 + x[:, 2:3] * w2 + b
    o_ref[...] = y.astype(o_ref.dtype)


def x_tron_forward(x, weight, bias):
    """Forward pass of x_tron.

    x:      (B, 3)  float32
    weight: (1, 3)  float32   (PyTorch Linear weight layout: (out, in))
    bias:   (1,)    float32
    returns (B, 1)  float32
    """
    B = x.shape[0]
    dtype = x.dtype

    # Batch tile: multiple of 8 (sublane), capped at MAX_TILE_B.
    tb = min(MAX_TILE_B, _round_up(B, 8))
    b_pad = _round_up(B, tb)
    if b_pad != B:
        x = jnp.pad(x, ((0, b_pad - B), (0, 0)))

    # Tiny parameter vector [w0, w1, w2, b] -> SMEM.
    params = jnp.concatenate(
        [weight.reshape(-1), bias.reshape(-1)]
    ).astype(jnp.float32)

    grid = (b_pad // tb,)

    out = pl.pallas_call(
        _linear3_kernel,
        out_shape=jax.ShapeDtypeStruct((b_pad, OUT_FEATURES), dtype),
        grid=grid,
        in_specs=[
            # whole f32[4] parameter array, resident in SMEM
            pl.BlockSpec(memory_space=pltpu.MemorySpace.SMEM),
            # unpadded (TB, 3) batch tile; last dim equals full array dim
            pl.BlockSpec((tb, IN_FEATURES), lambda i: (i, 0)),
        ],
        out_specs=pl.BlockSpec((tb, OUT_FEATURES), lambda i: (i, 0)),
        compiler_params=pltpu.CompilerParams(
            dimension_semantics=("parallel",),
        ),
        cost_estimate=pl.CostEstimate(
            flops=6 * b_pad,            # 3 mul + 3 add per row
            transcendentals=0,
            bytes_accessed=16 * b_pad + 16,  # 12 B read + 4 B written per row
        ),
    )(params, x)

    return out[:B]


if __name__ == "__main__":
    key = jax.random.PRNGKey(0)
    k_x, k_w, k_b = jax.random.split(key, 3)

    # deterministic synthetic parameters (shapes per nn.Linear(3, 1))
    bound = 1.0 / (IN_FEATURES ** 0.5)
    weight = jax.random.uniform(
        k_w, (OUT_FEATURES, IN_FEATURES), jnp.float32, -bound, bound
    )
    bias = jax.random.uniform(k_b, (OUT_FEATURES,), jnp.float32, -bound, bound)

    # small example input: batch of 8 roll-state vectors of size 3
    x = jax.random.normal(k_x, (8, IN_FEATURES), jnp.float32)

    y = x_tron_forward(x, weight, bias)
    y = jax.block_until_ready(y)

    # reference check (plain JAX, same math as torch Linear)
    y_ref = x @ weight.T + bias
    assert y.shape == (8, OUT_FEATURES)
    assert jnp.allclose(y, y_ref, atol=1e-5, rtol=1e-5)

    print("KERNEL_OK")
</pallas_src>

<mosaic_0001>
module attributes {stable_mosaic.version = 11 : i64} {
  func.func @_linear3_kernel(%arg0: i32, %arg1: memref<4xf32, #tpu.memory_space<smem>>, %arg2: memref<8x3xf32, #tpu.memory_space<vmem>>, %arg3: memref<8x1xf32, #tpu.memory_space<vmem>>) attributes {dimension_semantics = [#tpu.dimension_semantics<parallel>], iteration_bounds = array<i64: 1>, scalar_prefetch = 0 : i64, scratch_operands = 0 : i64, tpu.core_type = #tpu.core_type<tc>, window_params = [{transform_indices = @transform_0, window_bounds = array<i64: 4>}, {transform_indices = @transform_1, window_bounds = array<i64: 8, 3>}, {transform_indices = @transform_2, window_bounds = array<i64: 8, 1>}]} {
    %c0 = arith.constant 0 : index
    %c0_0 = arith.constant 0 : index
    %0 = vector.load %arg2[%c0, %c0_0] : memref<8x3xf32, #tpu.memory_space<vmem>>, vector<8x3xf32>
    %c0_1 = arith.constant 0 : index
    %1 = memref.load %arg1[%c0_1] : memref<4xf32, #tpu.memory_space<smem>>
    %c1 = arith.constant 1 : index
    %2 = memref.load %arg1[%c1] : memref<4xf32, #tpu.memory_space<smem>>
    %c2 = arith.constant 2 : index
    %3 = memref.load %arg1[%c2] : memref<4xf32, #tpu.memory_space<smem>>
    %c3 = arith.constant 3 : index
    %4 = memref.load %arg1[%c3] : memref<4xf32, #tpu.memory_space<smem>>
    %5 = vector.extract_strided_slice %0 {offsets = [0, 0], sizes = [8, 1], strides = [1, 1]} : vector<8x3xf32> to vector<8x1xf32>
    %6 = vector.broadcast %1 : f32 to vector<8x1xf32>
    %7 = arith.mulf %5, %6 : vector<8x1xf32>
    %8 = vector.extract_strided_slice %0 {offsets = [0, 1], sizes = [8, 1], strides = [1, 1]} : vector<8x3xf32> to vector<8x1xf32>
    %9 = vector.broadcast %2 : f32 to vector<8x1xf32>
    %10 = arith.mulf %8, %9 : vector<8x1xf32>
    %11 = arith.addf %7, %10 : vector<8x1xf32>
    %12 = vector.extract_strided_slice %0 {offsets = [0, 2], sizes = [8, 1], strides = [1, 1]} : vector<8x3xf32> to vector<8x1xf32>
    %13 = vector.broadcast %3 : f32 to vector<8x1xf32>
    %14 = arith.mulf %12, %13 : vector<8x1xf32>
    %15 = arith.addf %11, %14 : vector<8x1xf32>
    %16 = vector.broadcast %4 : f32 to vector<8x1xf32>
    %17 = arith.addf %15, %16 : vector<8x1xf32>
    %c0_2 = arith.constant 0 : index
    %c0_3 = arith.constant 0 : index
    %18 = vector.load %arg3[%c0_2, %c0_3] : memref<8x1xf32, #tpu.memory_space<vmem>>, vector<8x1xf32>
    tpu.vector_store %arg3[%c0_2, %c0_3], %17 {strides = array<i32>} : memref<8x1xf32, #tpu.memory_space<vmem>>, vector<8x1xf32>,
    return
  }
  func.func @transform_0(%arg0: i32) -> i32 {
    %c0_i32 = arith.constant 0 : i32
    %c0_i32_0 = arith.constant 0 : i32
    return %c0_i32 : i32
  }
  func.func @transform_1(%arg0: i32) -> (i32, i32) {
    %c0_i32 = arith.constant 0 : i32
    %c0_i32_0 = arith.constant 0 : i32
    return %arg0, %c0_i32 : i32, i32
  }
  func.func @transform_2(%arg0: i32) -> (i32, i32) {
    %c0_i32 = arith.constant 0 : i32
    %c0_i32_0 = arith.constant 0 : i32
    return %arg0, %c0_i32 : i32, i32
  }
}

</mosaic_0001>

<llo_original>
// kernel: tpu_custom_call.1
$region0: #{tpu_custom_call.1}
  #allocation0 [shape = 'u32[]', space=smem, size = 0x4, offset = 0x4, fixed_abs, tag = 'smem constant byte address 0x4 - core index']
  #allocation1 [shape = 'u32[144,128]{1,0:T(1,128)}', space=vmem, size = 0x12000, scoped, tag = 'internal scratch']
  %s0 = inlined_call_operand.vmem [shape: f32[4], index: 0, kind: input, shape index: {}]
  %s1 = inlined_call_operand.vmem [shape: f32[8,3], index: 1, kind: input, shape index: {}]
  %s2 = inlined_call_operand.vmem [shape: f32[8,1], index: 2, kind: output, shape index: {}]
  %s3 = sld [smem:[#allocation0]]
  $region22: #{tpu_custom_call.1} parent=0
    _
  %s5 = ssub.s32 1, %s3
  %s6 = scalar_select 0, %s5, %s3
  $region1: #{tpu_custom_call.1} parent=0
    #allocation2 [shape = 'u8[512]{0}', space=smem, size = 0x200, scoped, tag = 'input window, operand 0, single buffered']
    #allocation3 [shape = 's32[1]{0}', space=sflag, size = 0x4, scoped, tag = 'scoped memory for tpu_custom_call.1']
    %7 = vsyncpa [#allocation3], 0
    // Predicated region
    $region2: #{tpu_custom_call.1} parent=1 // pred_check
      _
    $region3: #{tpu_custom_call.1} parent=1 // pred_check_branch
      %9 = sbr.rel (0) target = $region5
    $region4: #{tpu_custom_call.1} parent=1 // pred_region
      %s11 = ssub.s32 16, 16
      %12 = vsyncadd [#allocation3], %s11
      %s14 = sshll.u32 %s0, 4
      %s15 = int_to_ptr.vmem [resolvable:$true] %s14
      %17 = dma.vmem_to_smem %s15, 16, [#allocation2], [#allocation3]
    $region5: #{tpu_custom_call.1} parent=1 // pred_fallthru
      _
    // Predicated region
    $region6: #{tpu_custom_call.1} parent=1 // pred_check
      _
    $region7: #{tpu_custom_call.1} parent=1 // pred_check_branch
      %19 = sbr.rel (0) target = $region9
    $region8: #{tpu_custom_call.1} parent=1 // pred_region
      _
    $region9: #{tpu_custom_call.1} parent=1 // pred_fallthru
      _
    // Predicated region
    $region10: #{tpu_custom_call.1} parent=1 // pred_check
      _
    $region11: #{tpu_custom_call.1} parent=1 // pred_check_branch
      %21 = sbr.rel (0) target = $region13
    $region12: #{tpu_custom_call.1} parent=1 // pred_region
      %22 = dma.done [#allocation3], 16
    $region13: #{tpu_custom_call.1} parent=1 // pred_fallthru
      _
    %23 = sfence
    %v24 = vld [vmem:[%s1] sm:$0xff]
    %s25 = sld [smem:[#allocation2]]
    %s26 = sld [smem:[#allocation2 + $0x1]]
    %s27 = sld [smem:[#allocation2 + $0x2]]
    %s28 = sld [smem:[#allocation2 + $0x3]]
    %v29 = vstv %s25
    %v30 = vmul.f32 %v24, %v29
    %v31 = vstv %s26
    %v32 = vmul.f32 %v24, %v31
    %34 = vrot.lane.b32.xlu0 %v32, 127
    %v35 = vpop.permute.xlu0 %34
    %v37 = vadd.f32 %v30, %v35
    %v38 = vstv %s27
    %v39 = vmul.f32 %v24, %v38
    %41 = vrot.lane.b32.xlu0 %v39, 126
    %v42 = vpop.permute.xlu0 %41
    %v44 = vadd.f32 %v37, %v42
    %v45 = vstv %s28
    %v46 = vadd.f32 %v44, %v45
    %vm47 = vcmask 7168
    %48 = vst.msk [vmem:[%s2] sm:$0xff] %vm47, %v46
    // Predicated region
    $region14: #{tpu_custom_call.1} parent=1 // pred_check
      _
    $region15: #{tpu_custom_call.1} parent=1 // pred_check_branch
      %50 = sbr.rel (0) target = $region17
    $region16: #{tpu_custom_call.1} parent=1 // pred_region
      _
    $region17: #{tpu_custom_call.1} parent=1 // pred_fallthru
      _
    // Predicated region
    $region18: #{tpu_custom_call.1} parent=1 // pred_check
      _
    $region19: #{tpu_custom_call.1} parent=1 // pred_check_branch
      %52 = sbr.rel (0) target = $region21
    $region20: #{tpu_custom_call.1} parent=1 // pred_region
      _
    $region21: #{tpu_custom_call.1} parent=1 // pred_fallthru
      _
    %53 = vsyncpa [#allocation3], 1

</llo_original>
